<compile_context>
chip_gen: v7x
topology: tpu7x:2x2x1
jax: 0.10.0
libtpu: 0.0.40
codegen_flags: <defaults>
</compile_context>

<pallas_src>
import functools
import math

import jax
import jax.numpy as jnp
from jax.experimental import pallas as pl
from jax.experimental.pallas import tpu as pltpu


# ---------------------------------------------------------------------------
# helpers
# ---------------------------------------------------------------------------
def _round_up(x, m):
    return (x + m - 1) // m * m


def _pick_tk(K, cap=512):
    """K tile: multiple of 128 dividing K, else a single full-K block (no padding)."""
    if K % 128 != 0:
        return K
    for t in (cap, 384, 256, 128):
        if t <= K and K % t == 0:
            return t
    return K


# ---------------------------------------------------------------------------
# Kernel 1: tiled matmul + bias (+ ReLU)   y = act(x @ w + b)
# ---------------------------------------------------------------------------
def _matmul_bias_kernel(x_ref, w_ref, b_ref, o_ref, acc_ref, *, relu):
    @pl.when(pl.program_id(2) == 0)
    def _():
        acc_ref[...] = jnp.zeros_like(acc_ref)

    acc_ref[...] += jnp.dot(x_ref[...], w_ref[...],
                            preferred_element_type=jnp.float32)

    @pl.when(pl.program_id(2) == pl.num_programs(2) - 1)
    def _():
        y = acc_ref[...] + b_ref[...]          # f32 epilogue on the VPU
        if relu:
            y = jnp.maximum(y, 0.0)
        o_ref[...] = y.astype(o_ref.dtype)     # cast only at the store


def matmul_bias(x, w, b, *, n_out=None, relu=False, out_dtype=jnp.float32,
                tm_cap=256, tn_cap=256, tk_cap=512):
    """x:(M,K) any float; w:(K,Npad) bf16, Npad % 128 == 0; b:(1,Npad) f32."""
    M, K = x.shape
    Kw, Np = w.shape
    assert Kw == K and Np % 128 == 0 and b.shape == (1, Np)

    tm = min(tm_cap, _round_up(M, 8))
    Mp = _round_up(M, tm)
    tn = tn_cap if Np % tn_cap == 0 else 128
    tk = _pick_tk(K, tk_cap)

    xp = x.astype(jnp.bfloat16)
    if Mp != M:
        xp = jnp.pad(xp, ((0, Mp - M), (0, 0)))

    out = pl.pallas_call(
        functools.partial(_matmul_bias_kernel, relu=relu),
        out_shape=jax.ShapeDtypeStruct((Mp, Np), out_dtype),
        grid=(Mp // tm, Np // tn, K // tk),
        in_specs=[
            pl.BlockSpec((tm, tk), lambda i, j, k: (i, k)),
            pl.BlockSpec((tk, tn), lambda i, j, k: (k, j)),
            pl.BlockSpec((1, tn), lambda i, j, k: (0, j)),
        ],
        out_specs=pl.BlockSpec((tm, tn), lambda i, j, k: (i, j)),
        scratch_shapes=[pltpu.VMEM((tm, tn), jnp.float32)],
        compiler_params=pltpu.CompilerParams(
            dimension_semantics=("parallel", "parallel", "arbitrary")),
    )(xp, w.astype(jnp.bfloat16), b.astype(jnp.float32))

    if n_out is None:
        n_out = Np
    return out[:M, :n_out]


# ---------------------------------------------------------------------------
# Kernel 2: fused  sub_out-Linear  ->  *sqrt(d)  ->  LayerNorm  ->  out_linear
#   writes both `hidden` (post-LN) and `out_nosm` (lane-dense padded N).
# ---------------------------------------------------------------------------
def _subout_ln_out_kernel(x_ref, sw_ref, sb_ref, g_ref, be_ref, ow_ref, ob_ref,
                          hid_ref, out_ref, acc_ref, *, eps, pre_scale):
    @pl.when(pl.program_id(1) == 0)
    def _():
        acc_ref[...] = jnp.zeros_like(acc_ref)

    acc_ref[...] += jnp.dot(x_ref[...], sw_ref[...],
                            preferred_element_type=jnp.float32)

    @pl.when(pl.program_id(1) == pl.num_programs(1) - 1)
    def _():
        # sub_out bias + RelPositionalEncoding sqrt(d) scale
        h = (acc_ref[...] + sb_ref[...]) * pre_scale
        mean = jnp.mean(h, axis=-1, keepdims=True)
        hc = h - mean
        var = jnp.mean(hc * hc, axis=-1, keepdims=True)
        hn = hc * jax.lax.rsqrt(var + eps) * g_ref[...] + be_ref[...]
        hid_ref[...] = hn
        out_ref[...] = (jnp.dot(hn.astype(jnp.bfloat16), ow_ref[...],
                                preferred_element_type=jnp.float32)
                        + ob_ref[...])


def subout_ln_out(x, sub_w, sub_b, gamma, beta, out_w, out_b, *, pre_scale, eps):
    """x:(M, F2*d) -> hidden:(M, d) f32, out_pad:(M, Npad) f32."""
    M, K = x.shape
    D = sub_w.shape[1]
    Np = out_w.shape[1]

    tk = _pick_tk(K)
    tm = min(256, _round_up(M, 8))
    Mp = _round_up(M, tm)

    xp = x.astype(jnp.bfloat16)
    if Mp != M:
        xp = jnp.pad(xp, ((0, Mp - M), (0, 0)))

    hidden, out = pl.pallas_call(
        functools.partial(_subout_ln_out_kernel, eps=eps, pre_scale=pre_scale),
        out_shape=(jax.ShapeDtypeStruct((Mp, D), jnp.float32),
                   jax.ShapeDtypeStruct((Mp, Np), jnp.float32)),
        grid=(Mp // tm, K // tk),
        in_specs=[
            pl.BlockSpec((tm, tk), lambda i, k: (i, k)),
            pl.BlockSpec((tk, D), lambda i, k: (k, 0)),
            pl.BlockSpec((1, D), lambda i, k: (0, 0)),
            pl.BlockSpec((1, D), lambda i, k: (0, 0)),
            pl.BlockSpec((1, D), lambda i, k: (0, 0)),
            pl.BlockSpec((D, Np), lambda i, k: (0, 0)),
            pl.BlockSpec((1, Np), lambda i, k: (0, 0)),
        ],
        out_specs=(pl.BlockSpec((tm, D), lambda i, k: (i, 0)),
                   pl.BlockSpec((tm, Np), lambda i, k: (i, 0))),
        scratch_shapes=[pltpu.VMEM((tm, D), jnp.float32)],
        compiler_params=pltpu.CompilerParams(
            dimension_semantics=("parallel", "arbitrary")),
    )(xp, sub_w, sub_b, gamma, beta, out_w, out_b)

    return hidden[:M], out[:M]


# ---------------------------------------------------------------------------
# im2col glue (plain JAX, bf16); conv = im2col + tiled Pallas matmul
# ---------------------------------------------------------------------------
def _im2col_3x3_s2(x_nhwc):
    B, H, W, C = x_nhwc.shape
    Ho = (H - 3) // 2 + 1
    Wo = (W - 3) // 2 + 1
    patches = []
    for i in range(3):                 # ordering (kh, kw, cin) — matches weight layout
        for j in range(3):
            patches.append(x_nhwc[:, i:i + 2 * Ho:2, j:j + 2 * Wo:2, :])
    return jnp.concatenate(patches, axis=-1), Ho, Wo


# ---------------------------------------------------------------------------
# Parameter init (torch layout, deterministic synthetic) + one-time preparation
# ---------------------------------------------------------------------------
def init_params(key, input_dim, attention_dim, output_dim, in_ch=1):
    freq = input_dim // in_ch
    f1 = (freq - 3) // 2 + 1
    f2 = (f1 - 3) // 2 + 1
    ks = jax.random.split(key, 8)

    def norm(k, shape, scale=0.05):
        return scale * jax.random.normal(k, shape, dtype=jnp.float32)

    return {
        "conv1_w": norm(ks[0], (attention_dim, in_ch, 3, 3)),
        "conv1_b": norm(ks[1], (attention_dim,)),
        "conv2_w": norm(ks[2], (attention_dim, attention_dim, 3, 3)),
        "conv2_b": norm(ks[3], (attention_dim,)),
        "sub_out_w": norm(ks[4], (attention_dim, attention_dim * f2)),  # torch Linear (out,in)
        "sub_out_b": norm(ks[5], (attention_dim,)),
        "after_norm_g": jnp.ones((attention_dim,), jnp.float32),
        "after_norm_b": jnp.zeros((attention_dim,), jnp.float32),
        "out_w": norm(ks[6], (output_dim, attention_dim)),              # torch Linear (out,in)
        "out_b": norm(ks[7], (output_dim,)),
    }


def prepare_params(raw, input_dim, in_ch=1):
    """One-time weight permutation / transpose / N-padding / bf16 cast (no per-call cost)."""
    d = raw["conv1_w"].shape[0]
    out_dim = raw["out_w"].shape[0]
    f1 = (input_dim // in_ch - 3) // 2 + 1
    f2 = (f1 - 3) // 2 + 1
    d_pad = _round_up(d, 128)
    o_pad = _round_up(out_dim, 128)

    def conv_mat(w):  # (Cout, Cin, 3, 3) -> (9*Cin, Cout) padded to d_pad cols
        cout, cin = w.shape[0], w.shape[1]
        m = jnp.transpose(w, (2, 3, 1, 0)).reshape(9 * cin, cout)
        return jnp.pad(m, ((0, 0), (0, d_pad - cout))).astype(jnp.bfloat16)

    def pad_bias(b, n_pad):
        return jnp.pad(b, (0, n_pad - b.shape[0])).reshape(1, n_pad).astype(jnp.float32)

    # sub_out: torch weight is (d, d*f2) over a (c, f)-flattened input; we feed the
    # natural (f, c) flatten of the conv2 output, so permute the columns once here.
    sw = raw["sub_out_w"].reshape(d, d, f2)            # (out, c, f)
    sw = jnp.transpose(sw, (2, 1, 0)).reshape(f2 * d, d)  # rows indexed f*d + c

    ow = jnp.pad(raw["out_w"].T, ((0, 0), (0, o_pad - out_dim)))

    return {
        "conv1_w": conv_mat(raw["conv1_w"]), "conv1_b": pad_bias(raw["conv1_b"], d_pad),
        "conv2_w": conv_mat(raw["conv2_w"]), "conv2_b": pad_bias(raw["conv2_b"], d_pad),
        "sub_w": sw.astype(jnp.bfloat16),
        "sub_b": raw["sub_out_b"].reshape(1, d).astype(jnp.float32),
        "ln_g": raw["after_norm_g"].reshape(1, d).astype(jnp.float32),
        "ln_b": raw["after_norm_b"].reshape(1, d).astype(jnp.float32),
        "out_w": ow.astype(jnp.bfloat16),
        "out_b": pad_bias(raw["out_b"], o_pad),
        "d": int(d), "out_dim": int(out_dim), "f2": int(f2),
    }


# ---------------------------------------------------------------------------
# Forward (BaseCTCEncoder.forward, inference semantics)
# ---------------------------------------------------------------------------
def base_ctc_encoder_forward(prep, xs, xs_lens):
    d = prep["d"]
    out_dim = prep["out_dim"]
    B, T, _ = xs.shape

    # masks = ~make_pad_mask(xs_lens).unsqueeze(1)  -> True on valid frames
    masks = (jnp.arange(T)[None, :] < xs_lens[:, None])[:, None, :]          # (B, 1, T)

    # ---- Conv2dSubsampling4 (conv_subsample_in_ch = 1), NHWC layout ----
    x = xs[:, :, :, None].astype(jnp.bfloat16)                               # (B, T, F, 1)
    p1, T1, F1 = _im2col_3x3_s2(x)                                           # (B,T1,F1,9)
    # NOTE: conv1 has K = 9 (Cin=1) — MXU-underutilized but a tiny fraction of total FLOPs.
    y1 = matmul_bias(p1.reshape(B * T1 * F1, 9), prep["conv1_w"], prep["conv1_b"],
                     n_out=d, relu=True, out_dtype=jnp.bfloat16)
    y1 = y1.reshape(B, T1, F1, d)

    p2, T2, F2 = _im2col_3x3_s2(y1)                                          # (B,T2,F2,9d)
    y2 = matmul_bias(p2.reshape(B * T2 * F2, 9 * d), prep["conv2_w"], prep["conv2_b"],
                     n_out=d, relu=True, out_dtype=jnp.bfloat16)
    # natural (f, c) flatten — the column permutation lives in prep["sub_w"]
    y2 = y2.reshape(B * T2, F2 * d)

    # ---- fused: sub_out Linear -> *sqrt(d) (RelPositionalEncoding, dropout=id)
    #             -> after_norm LayerNorm(eps=1e-12) -> out_linear ----
    xscale = math.sqrt(float(d))
    hidden, out_pad = subout_ln_out(y2, prep["sub_w"], prep["sub_b"], prep["ln_g"],
                                    prep["ln_b"], prep["out_w"], prep["out_b"],
                                    pre_scale=xscale, eps=1e-12)

    out_nosm = out_pad[:, :out_dim].reshape(B, T2, out_dim)
    hidden = hidden.reshape(B, T2, d)

    # mask subsampling: x_mask[:, :, 2::2][:, :, 2::2]
    sub_masks = masks[:, :, 2::2][:, :, 2::2]                                # (B, 1, T2)
    out_lens = jnp.sum(sub_masks.astype(jnp.int32), axis=-1).reshape(-1)     # (B,)

    return {"out_nosm": out_nosm, "out_lens": out_lens, "hidden": hidden}


# ---------------------------------------------------------------------------
if __name__ == "__main__":
    key = jax.random.PRNGKey(0)
    B, T, input_dim = 2, 16, 16          # xs: (B, T, D)
    attention_dim, output_dim = 32, 8

    k_params, k_x = jax.random.split(key)
    raw_params = init_params(k_params, input_dim, attention_dim, output_dim)
    prep = prepare_params(raw_params, input_dim)

    xs = jax.random.normal(k_x, (B, T, input_dim), dtype=jnp.float32)
    xs_lens = jnp.array([16, 12], dtype=jnp.int32)

    fwd = jax.jit(functools.partial(base_ctc_encoder_forward, prep))
    res = fwd(xs, xs_lens)
    jax.block_until_ready(res)

    T2 = 3
    assert res["out_nosm"].shape == (B, T2, output_dim)
    assert res["hidden"].shape == (B, T2, attention_dim)
    assert res["out_lens"].shape == (B,)
    assert int(res["out_lens"][0]) == 3 and int(res["out_lens"][1]) == 2
    assert bool(jnp.all(jnp.isfinite(res["out_nosm"])))
    print("KERNEL_OK")
</pallas_src>

<mosaic_0001>
module attributes {stable_mosaic.version = 11 : i64} {
  func.func @_matmul_bias_kernel(%arg0: i32, %arg1: i32, %arg2: i32, %arg3: memref<104x9xbf16, #tpu.memory_space<vmem>>, %arg4: memref<9x128xbf16, #tpu.memory_space<vmem>>, %arg5: memref<1x128xf32, #tpu.memory_space<vmem>>, %arg6: memref<104x128xbf16, #tpu.memory_space<vmem>>, %arg7: memref<104x128xf32, #tpu.memory_space<vmem>>) attributes {dimension_semantics = [#tpu.dimension_semantics<parallel>, #tpu.dimension_semantics<parallel>, #tpu.dimension_semantics<arbitrary>], iteration_bounds = array<i64: 1, 1, 1>, scalar_prefetch = 0 : i64, scratch_operands = 1 : i64, tpu.core_type = #tpu.core_type<tc>, window_params = [{transform_indices = @transform_0, window_bounds = array<i64: 104, 9>}, {transform_indices = @transform_1, window_bounds = array<i64: 9, 128>}, {transform_indices = @transform_2, window_bounds = array<i64: 1, 128>}, {transform_indices = @transform_3, window_bounds = array<i64: 104, 128>}]} {
    %c0_i32 = arith.constant 0 : i32
    %0 = arith.cmpi eq, %arg2, %c0_i32 : i32
    %1 = arith.extui %0 : i1 to i32
    %c0_i32_0 = arith.constant 0 : i32
    %2 = arith.cmpi ne, %1, %c0_i32_0 : i32
    scf.if %2 {
      %cst_10 = arith.constant 0.000000e+00 : f32
      %12 = vector.broadcast %cst_10 : f32 to vector<104x128xf32>
      %c0_11 = arith.constant 0 : index
      %c0_12 = arith.constant 0 : index
      %13 = vector.load %arg7[%c0_11, %c0_12] : memref<104x128xf32, #tpu.memory_space<vmem>>, vector<104x128xf32>
      tpu.vector_store %arg7[%c0_11, %c0_12], %12 {strides = array<i32>} : memref<104x128xf32, #tpu.memory_space<vmem>>, vector<104x128xf32>,
    } else {
    }
    %c0 = arith.constant 0 : index
    %c0_1 = arith.constant 0 : index
    %3 = vector.load %arg7[%c0, %c0_1] : memref<104x128xf32, #tpu.memory_space<vmem>>, vector<104x128xf32>
    %c0_2 = arith.constant 0 : index
    %c0_3 = arith.constant 0 : index
    %4 = vector.load %arg3[%c0_2, %c0_3] : memref<104x9xbf16, #tpu.memory_space<vmem>>, vector<104x9xbf16>
    %c0_4 = arith.constant 0 : index
    %c0_5 = arith.constant 0 : index
    %5 = vector.load %arg4[%c0_4, %c0_5] : memref<9x128xbf16, #tpu.memory_space<vmem>>, vector<9x128xbf16>
    %cst = arith.constant dense<0.000000e+00> : vector<104x128xf32>
    %6 = tpu.matmul %4, %5, %cst {dimension_numbers = #tpu.dot_dimension_numbers<[1], [0], [0], [1], [0, 0, 1, 1], [], []>} : vector<104x9xbf16>, vector<9x128xbf16>, vector<104x128xf32> -> vector<104x128xf32>
    %7 = arith.addf %3, %6 : vector<104x128xf32>
    %c0_6 = arith.constant 0 : index
    %c0_7 = arith.constant 0 : index
    %8 = vector.load %arg7[%c0_6, %c0_7] : memref<104x128xf32, #tpu.memory_space<vmem>>, vector<104x128xf32>
    tpu.vector_store %arg7[%c0_6, %c0_7], %7 {strides = array<i32>} : memref<104x128xf32, #tpu.memory_space<vmem>>, vector<104x128xf32>,
    %c0_i32_8 = arith.constant 0 : i32
    %9 = arith.cmpi eq, %arg2, %c0_i32_8 : i32
    %10 = arith.extui %9 : i1 to i32
    %c0_i32_9 = arith.constant 0 : i32
    %11 = arith.cmpi ne, %10, %c0_i32_9 : i32
    scf.if %11 {
      %c0_10 = arith.constant 0 : index
      %c0_11 = arith.constant 0 : index
      %12 = vector.load %arg7[%c0_10, %c0_11] : memref<104x128xf32, #tpu.memory_space<vmem>>, vector<104x128xf32>
      %c0_12 = arith.constant 0 : index
      %c0_13 = arith.constant 0 : index
      %13 = vector.load %arg5[%c0_12, %c0_13] : memref<1x128xf32, #tpu.memory_space<vmem>>, vector<1x128xf32>
      %14 = vector.broadcast %13 : vector<1x128xf32> to vector<104x128xf32>
      %15 = arith.addf %12, %14 : vector<104x128xf32>
      %cst_14 = arith.constant 0.000000e+00 : f32
      %16 = vector.broadcast %cst_14 : f32 to vector<104x128xf32>
      %17 = arith.maximumf %15, %16 : vector<104x128xf32>
      %18 = arith.truncf %17 : vector<104x128xf32> to vector<104x128xbf16>
      %c0_15 = arith.constant 0 : index
      %c0_16 = arith.constant 0 : index
      %19 = vector.load %arg6[%c0_15, %c0_16] : memref<104x128xbf16, #tpu.memory_space<vmem>>, vector<104x128xbf16>
      tpu.vector_store %arg6[%c0_15, %c0_16], %18 {strides = array<i32>} : memref<104x128xbf16, #tpu.memory_space<vmem>>, vector<104x128xbf16>,
    } else {
    }
    return
  }
  func.func @transform_0(%arg0: i32, %arg1: i32, %arg2: i32) -> (i32, i32) {
    %c0_i32 = arith.constant 0 : i32
    return %arg0, %arg2 : i32, i32
  }
  func.func @transform_1(%arg0: i32, %arg1: i32, %arg2: i32) -> (i32, i32) {
    %c0_i32 = arith.constant 0 : i32
    return %arg2, %arg1 : i32, i32
  }
  func.func @transform_2(%arg0: i32, %arg1: i32, %arg2: i32) -> (i32, i32) {
    %c0_i32 = arith.constant 0 : i32
    %c0_i32_0 = arith.constant 0 : i32
    return %c0_i32, %arg1 : i32, i32
  }
  func.func @transform_3(%arg0: i32, %arg1: i32, %arg2: i32) -> (i32, i32) {
    %c0_i32 = arith.constant 0 : i32
    return %arg0, %arg1 : i32, i32
  }
}

module attributes {stable_mosaic.version = 11 : i64} {
  func.func @_matmul_bias_kernel(%arg0: i32, %arg1: i32, %arg2: i32, %arg3: memref<24x288xbf16, #tpu.memory_space<vmem>>, %arg4: memref<288x128xbf16, #tpu.memory_space<vmem>>, %arg5: memref<1x128xf32, #tpu.memory_space<vmem>>, %arg6: memref<24x128xbf16, #tpu.memory_space<vmem>>, %arg7: memref<24x128xf32, #tpu.memory_space<vmem>>) attributes {dimension_semantics = [#tpu.dimension_semantics<parallel>, #tpu.dimension_semantics<parallel>, #tpu.dimension_semantics<arbitrary>], iteration_bounds = array<i64: 1, 1, 1>, scalar_prefetch = 0 : i64, scratch_operands = 1 : i64, tpu.core_type = #tpu.core_type<tc>, window_params = [{transform_indices = @transform_0, window_bounds = array<i64: 24, 288>}, {transform_indices = @transform_1, window_bounds = array<i64: 288, 128>}, {transform_indices = @transform_2, window_bounds = array<i64: 1, 128>}, {transform_indices = @transform_3, window_bounds = array<i64: 24, 128>}]} {
    %c0_i32 = arith.constant 0 : i32
    %0 = arith.cmpi eq, %arg2, %c0_i32 : i32
    %1 = arith.extui %0 : i1 to i32
    %c0_i32_0 = arith.constant 0 : i32
    %2 = arith.cmpi ne, %1, %c0_i32_0 : i32
    scf.if %2 {
      %cst_10 = arith.constant 0.000000e+00 : f32
      %12 = vector.broadcast %cst_10 : f32 to vector<24x128xf32>
      %c0_11 = arith.constant 0 : index
      %c0_12 = arith.constant 0 : index
      %13 = vector.load %arg7[%c0_11, %c0_12] : memref<24x128xf32, #tpu.memory_space<vmem>>, vector<24x128xf32>
      tpu.vector_store %arg7[%c0_11, %c0_12], %12 {strides = array<i32>} : memref<24x128xf32, #tpu.memory_space<vmem>>, vector<24x128xf32>,
    } else {
    }
    %c0 = arith.constant 0 : index
    %c0_1 = arith.constant 0 : index
    %3 = vector.load %arg7[%c0, %c0_1] : memref<24x128xf32, #tpu.memory_space<vmem>>, vector<24x128xf32>
    %c0_2 = arith.constant 0 : index
    %c0_3 = arith.constant 0 : index
    %4 = vector.load %arg3[%c0_2, %c0_3] : memref<24x288xbf16, #tpu.memory_space<vmem>>, vector<24x288xbf16>
    %c0_4 = arith.constant 0 : index
    %c0_5 = arith.constant 0 : index
    %5 = vector.load %arg4[%c0_4, %c0_5] : memref<288x128xbf16, #tpu.memory_space<vmem>>, vector<288x128xbf16>
    %cst = arith.constant dense<0.000000e+00> : vector<24x128xf32>
    %6 = tpu.matmul %4, %5, %cst {dimension_numbers = #tpu.dot_dimension_numbers<[1], [0], [0], [1], [0, 0, 1, 1], [], []>} : vector<24x288xbf16>, vector<288x128xbf16>, vector<24x128xf32> -> vector<24x128xf32>
    %7 = arith.addf %3, %6 : vector<24x128xf32>
    %c0_6 = arith.constant 0 : index
    %c0_7 = arith.constant 0 : index
    %8 = vector.load %arg7[%c0_6, %c0_7] : memref<24x128xf32, #tpu.memory_space<vmem>>, vector<24x128xf32>
    tpu.vector_store %arg7[%c0_6, %c0_7], %7 {strides = array<i32>} : memref<24x128xf32, #tpu.memory_space<vmem>>, vector<24x128xf32>,
    %c0_i32_8 = arith.constant 0 : i32
    %9 = arith.cmpi eq, %arg2, %c0_i32_8 : i32
    %10 = arith.extui %9 : i1 to i32
    %c0_i32_9 = arith.constant 0 : i32
    %11 = arith.cmpi ne, %10, %c0_i32_9 : i32
    scf.if %11 {
      %c0_10 = arith.constant 0 : index
      %c0_11 = arith.constant 0 : index
      %12 = vector.load %arg7[%c0_10, %c0_11] : memref<24x128xf32, #tpu.memory_space<vmem>>, vector<24x128xf32>
      %c0_12 = arith.constant 0 : index
      %c0_13 = arith.constant 0 : index
      %13 = vector.load %arg5[%c0_12, %c0_13] : memref<1x128xf32, #tpu.memory_space<vmem>>, vector<1x128xf32>
      %14 = vector.broadcast %13 : vector<1x128xf32> to vector<24x128xf32>
      %15 = arith.addf %12, %14 : vector<24x128xf32>
      %cst_14 = arith.constant 0.000000e+00 : f32
      %16 = vector.broadcast %cst_14 : f32 to vector<24x128xf32>
      %17 = arith.maximumf %15, %16 : vector<24x128xf32>
      %18 = arith.truncf %17 : vector<24x128xf32> to vector<24x128xbf16>
      %c0_15 = arith.constant 0 : index
      %c0_16 = arith.constant 0 : index
      %19 = vector.load %arg6[%c0_15, %c0_16] : memref<24x128xbf16, #tpu.memory_space<vmem>>, vector<24x128xbf16>
      tpu.vector_store %arg6[%c0_15, %c0_16], %18 {strides = array<i32>} : memref<24x128xbf16, #tpu.memory_space<vmem>>, vector<24x128xbf16>,
    } else {
    }
    return
  }
  func.func @transform_0(%arg0: i32, %arg1: i32, %arg2: i32) -> (i32, i32) {
    %c0_i32 = arith.constant 0 : i32
    return %arg0, %arg2 : i32, i32
  }
  func.func @transform_1(%arg0: i32, %arg1: i32, %arg2: i32) -> (i32, i32) {
    %c0_i32 = arith.constant 0 : i32
    return %arg2, %arg1 : i32, i32
  }
  func.func @transform_2(%arg0: i32, %arg1: i32, %arg2: i32) -> (i32, i32) {
    %c0_i32 = arith.constant 0 : i32
    %c0_i32_0 = arith.constant 0 : i32
    return %c0_i32, %arg1 : i32, i32
  }
  func.func @transform_3(%arg0: i32, %arg1: i32, %arg2: i32) -> (i32, i32) {
    %c0_i32 = arith.constant 0 : i32
    return %arg0, %arg1 : i32, i32
  }
}

module attributes {stable_mosaic.version = 11 : i64} {
  func.func @_subout_ln_out_kernel(%arg0: i32, %arg1: i32, %arg2: memref<8x96xbf16, #tpu.memory_space<vmem>>, %arg3: memref<96x32xbf16, #tpu.memory_space<vmem>>, %arg4: memref<1x32xf32, #tpu.memory_space<vmem>>, %arg5: memref<1x32xf32, #tpu.memory_space<vmem>>, %arg6: memref<1x32xf32, #tpu.memory_space<vmem>>, %arg7: memref<32x128xbf16, #tpu.memory_space<vmem>>, %arg8: memref<1x128xf32, #tpu.memory_space<vmem>>, %arg9: memref<8x32xf32, #tpu.memory_space<vmem>>, %arg10: memref<8x128xf32, #tpu.memory_space<vmem>>, %arg11: memref<8x32xf32, #tpu.memory_space<vmem>>) attributes {dimension_semantics = [#tpu.dimension_semantics<parallel>, #tpu.dimension_semantics<arbitrary>], iteration_bounds = array<i64: 1, 1>, scalar_prefetch = 0 : i64, scratch_operands = 1 : i64, tpu.core_type = #tpu.core_type<tc>, window_params = [{transform_indices = @transform_0, window_bounds = array<i64: 8, 96>}, {transform_indices = @transform_1, window_bounds = array<i64: 96, 32>}, {pipeline_mode = #tpu.pipeline_mode<synchronous>, transform_indices = @transform_2, window_bounds = array<i64: 1, 32>}, {pipeline_mode = #tpu.pipeline_mode<synchronous>, transform_indices = @transform_3, window_bounds = array<i64: 1, 32>}, {pipeline_mode = #tpu.pipeline_mode<synchronous>, transform_indices = @transform_4, window_bounds = array<i64: 1, 32>}, {pipeline_mode = #tpu.pipeline_mode<synchronous>, transform_indices = @transform_5, window_bounds = array<i64: 32, 128>}, {pipeline_mode = #tpu.pipeline_mode<synchronous>, transform_indices = @transform_6, window_bounds = array<i64: 1, 128>}, {transform_indices = @transform_7, window_bounds = array<i64: 8, 32>}, {transform_indices = @transform_8, window_bounds = array<i64: 8, 128>}]} {
    %c0_i32 = arith.constant 0 : i32
    %0 = arith.cmpi eq, %arg1, %c0_i32 : i32
    %1 = arith.extui %0 : i1 to i32
    %c0_i32_0 = arith.constant 0 : i32
    %2 = arith.cmpi ne, %1, %c0_i32_0 : i32
    scf.if %2 {
      %cst_10 = arith.constant 0.000000e+00 : f32
      %12 = vector.broadcast %cst_10 : f32 to vector<8x32xf32>
      %c0_11 = arith.constant 0 : index
      %c0_12 = arith.constant 0 : index
      %13 = vector.load %arg11[%c0_11, %c0_12] : memref<8x32xf32, #tpu.memory_space<vmem>>, vector<8x32xf32>
      tpu.vector_store %arg11[%c0_11, %c0_12], %12 {strides = array<i32>} : memref<8x32xf32, #tpu.memory_space<vmem>>, vector<8x32xf32>,
    } else {
    }
    %c0 = arith.constant 0 : index
    %c0_1 = arith.constant 0 : index
    %3 = vector.load %arg11[%c0, %c0_1] : memref<8x32xf32, #tpu.memory_space<vmem>>, vector<8x32xf32>
    %c0_2 = arith.constant 0 : index
    %c0_3 = arith.constant 0 : index
    %4 = vector.load %arg2[%c0_2, %c0_3] : memref<8x96xbf16, #tpu.memory_space<vmem>>, vector<8x96xbf16>
    %c0_4 = arith.constant 0 : index
    %c0_5 = arith.constant 0 : index
    %5 = vector.load %arg3[%c0_4, %c0_5] : memref<96x32xbf16, #tpu.memory_space<vmem>>, vector<96x32xbf16>
    %cst = arith.constant dense<0.000000e+00> : vector<8x32xf32>
    %6 = tpu.matmul %4, %5, %cst {dimension_numbers = #tpu.dot_dimension_numbers<[1], [0], [0], [1], [0, 0, 1, 1], [], []>} : vector<8x96xbf16>, vector<96x32xbf16>, vector<8x32xf32> -> vector<8x32xf32>
    %7 = arith.addf %3, %6 : vector<8x32xf32>
    %c0_6 = arith.constant 0 : index
    %c0_7 = arith.constant 0 : index
    %8 = vector.load %arg11[%c0_6, %c0_7] : memref<8x32xf32, #tpu.memory_space<vmem>>, vector<8x32xf32>
    tpu.vector_store %arg11[%c0_6, %c0_7], %7 {strides = array<i32>} : memref<8x32xf32, #tpu.memory_space<vmem>>, vector<8x32xf32>,
    %c0_i32_8 = arith.constant 0 : i32
    %9 = arith.cmpi eq, %arg1, %c0_i32_8 : i32
    %10 = arith.extui %9 : i1 to i32
    %c0_i32_9 = arith.constant 0 : i32
    %11 = arith.cmpi ne, %10, %c0_i32_9 : i32
    scf.if %11 {
      %c0_10 = arith.constant 0 : index
      %c0_11 = arith.constant 0 : index
      %12 = vector.load %arg11[%c0_10, %c0_11] : memref<8x32xf32, #tpu.memory_space<vmem>>, vector<8x32xf32>
      %c0_12 = arith.constant 0 : index
      %c0_13 = arith.constant 0 : index
      %13 = vector.load %arg4[%c0_12, %c0_13] : memref<1x32xf32, #tpu.memory_space<vmem>>, vector<1x32xf32>
      %14 = vector.broadcast %13 : vector<1x32xf32> to vector<8x32xf32>
      %15 = arith.addf %12, %14 : vector<8x32xf32>
      %cst_14 = arith.constant 5.65685415 : f32
      %16 = vector.broadcast %cst_14 : f32 to vector<8x32xf32>
      %17 = arith.mulf %15, %16 : vector<8x32xf32>
      %cst_15 = arith.constant dense<0.000000e+00> : vector<8xf32>
      %18 = vector.multi_reduction <add>, %17, %cst_15 [1] : vector<8x32xf32> to vector<8xf32>
      %19 = vector.shape_cast %18 : vector<8xf32> to vector<8x1xf32>
      %cst_16 = arith.constant 3.200000e+01 : f32
      %20 = vector.broadcast %cst_16 : f32 to vector<8x1xf32>
      %21 = arith.divf %19, %20 : vector<8x1xf32>
      %22 = vector.broadcast %21 : vector<8x1xf32> to vector<8x32xf32>
      %23 = arith.subf %17, %22 : vector<8x32xf32>
      %24 = arith.mulf %23, %23 : vector<8x32xf32>
      %cst_17 = arith.constant dense<0.000000e+00> : vector<8xf32>
      %25 = vector.multi_reduction <add>, %24, %cst_17 [1] : vector<8x32xf32> to vector<8xf32>
      %26 = vector.shape_cast %25 : vector<8xf32> to vector<8x1xf32>
      %cst_18 = arith.constant 3.200000e+01 : f32
      %27 = vector.broadcast %cst_18 : f32 to vector<8x1xf32>
      %28 = arith.divf %26, %27 : vector<8x1xf32>
      %cst_19 = arith.constant 9.99999996E-13 : f32
      %29 = vector.broadcast %cst_19 : f32 to vector<8x1xf32>
      %30 = arith.addf %28, %29 : vector<8x1xf32>
      %31 = math.rsqrt %30 : vector<8x1xf32>
      %32 = vector.broadcast %31 : vector<8x1xf32> to vector<8x32xf32>
      %33 = arith.mulf %23, %32 : vector<8x32xf32>
      %c0_20 = arith.constant 0 : index
      %c0_21 = arith.constant 0 : index
      %34 = vector.load %arg5[%c0_20, %c0_21] : memref<1x32xf32, #tpu.memory_space<vmem>>, vector<1x32xf32>
      %35 = vector.broadcast %34 : vector<1x32xf32> to vector<8x32xf32>
      %36 = arith.mulf %33, %35 : vector<8x32xf32>
      %c0_22 = arith.constant 0 : index
      %c0_23 = arith.constant 0 : index
      %37 = vector.load %arg6[%c0_22, %c0_23] : memref<1x32xf32, #tpu.memory_space<vmem>>, vector<1x32xf32>
      %38 = vector.broadcast %37 : vector<1x32xf32> to vector<8x32xf32>
      %39 = arith.addf %36, %38 : vector<8x32xf32>
      %c0_24 = arith.constant 0 : index
      %c0_25 = arith.constant 0 : index
      %40 = vector.load %arg9[%c0_24, %c0_25] : memref<8x32xf32, #tpu.memory_space<vmem>>, vector<8x32xf32>
      tpu.vector_store %arg9[%c0_24, %c0_25], %39 {strides = array<i32>} : memref<8x32xf32, #tpu.memory_space<vmem>>, vector<8x32xf32>,
      %41 = arith.truncf %39 : vector<8x32xf32> to vector<8x32xbf16>
      %c0_26 = arith.constant 0 : index
      %c0_27 = arith.constant 0 : index
      %42 = vector.load %arg7[%c0_26, %c0_27] : memref<32x128xbf16, #tpu.memory_space<vmem>>, vector<32x128xbf16>
      %cst_28 = arith.constant dense<0.000000e+00> : vector<8x128xf32>
      %43 = tpu.matmul %41, %42, %cst_28 {dimension_numbers = #tpu.dot_dimension_numbers<[1], [0], [0], [1], [0, 0, 1, 1], [], []>} : vector<8x32xbf16>, vector<32x128xbf16>, vector<8x128xf32> -> vector<8x128xf32>
      %c0_29 = arith.constant 0 : index
      %c0_30 = arith.constant 0 : index
      %44 = vector.load %arg8[%c0_29, %c0_30] : memref<1x128xf32, #tpu.memory_space<vmem>>, vector<1x128xf32>
      %45 = vector.broadcast %44 : vector<1x128xf32> to vector<8x128xf32>
      %46 = arith.addf %43, %45 : vector<8x128xf32>
      %c0_31 = arith.constant 0 : index
      %c0_32 = arith.constant 0 : index
      %47 = vector.load %arg10[%c0_31, %c0_32] : memref<8x128xf32, #tpu.memory_space<vmem>>, vector<8x128xf32>
      tpu.vector_store %arg10[%c0_31, %c0_32], %46 {strides = array<i32>} : memref<8x128xf32, #tpu.memory_space<vmem>>, vector<8x128xf32>,
    } else {
    }
    return
  }
  func.func @transform_0(%arg0: i32, %arg1: i32) -> (i32, i32) {
    %c0_i32 = arith.constant 0 : i32
    return %arg0, %arg1 : i32, i32
  }
  func.func @transform_1(%arg0: i32, %arg1: i32) -> (i32, i32) {
    %c0_i32 = arith.constant 0 : i32
    %c0_i32_0 = arith.constant 0 : i32
    return %arg1, %c0_i32 : i32, i32
  }
  func.func @transform_2(%arg0: i32, %arg1: i32) -> (i32, i32) {
    %c0_i32 = arith.constant 0 : i32
    %c0_i32_0 = arith.constant 0 : i32
    %c0_i32_1 = arith.constant 0 : i32
    return %c0_i32, %c0_i32_0 : i32, i32
  }
  func.func @transform_3(%arg0: i32, %arg1: i32) -> (i32, i32) {
    %c0_i32 = arith.constant 0 : i32
    %c0_i32_0 = arith.constant 0 : i32
    %c0_i32_1 = arith.constant 0 : i32
    return %c0_i32, %c0_i32_0 : i32, i32
  }
  func.func @transform_4(%arg0: i32, %arg1: i32) -> (i32, i32) {
    %c0_i32 = arith.constant 0 : i32
    %c0_i32_0 = arith.constant 0 : i32
    %c0_i32_1 = arith.constant 0 : i32
    return %c0_i32, %c0_i32_0 : i32, i32
  }
  func.func @transform_5(%arg0: i32, %arg1: i32) -> (i32, i32) {
    %c0_i32 = arith.constant 0 : i32
    %c0_i32_0 = arith.constant 0 : i32
    %c0_i32_1 = arith.constant 0 : i32
    return %c0_i32, %c0_i32_0 : i32, i32
  }
  func.func @transform_6(%arg0: i32, %arg1: i32) -> (i32, i32) {
    %c0_i32 = arith.constant 0 : i32
    %c0_i32_0 = arith.constant 0 : i32
    %c0_i32_1 = arith.constant 0 : i32
    return %c0_i32, %c0_i32_0 : i32, i32
  }
  func.func @transform_7(%arg0: i32, %arg1: i32) -> (i32, i32) {
    %c0_i32 = arith.constant 0 : i32
    %c0_i32_0 = arith.constant 0 : i32
    return %arg0, %c0_i32 : i32, i32
  }
  func.func @transform_8(%arg0: i32, %arg1: i32) -> (i32, i32) {
    %c0_i32 = arith.constant 0 : i32
    %c0_i32_0 = arith.constant 0 : i32
    return %arg0, %c0_i32 : i32, i32
  }
}

</mosaic_0001>

<llo_original>
// kernel: base_ctc_encoder_forward.3
$region0: #{base_ctc_encoder_forward.3}
  #allocation0 [shape = 'u32[]', space=smem, size = 0x4, offset = 0x4, fixed_abs, tag = 'smem constant byte address 0x4 - core index']
  #allocation1 [shape = 'u32[144,128]{1,0:T(1,128)}', space=vmem, size = 0x12000, scoped, tag = 'internal scratch']
  #allocation2 [shape = 'f32[104,128]{1,0:T(8,128)}', space=vmem, size = 0xd000, scoped, tag = 'scratch operand']
  %s0 = inlined_call_operand.vmem [shape: bf16[104,9], index: 0, kind: input, shape index: {}]
  %s1 = inlined_call_operand.vmem [shape: bf16[9,128], index: 1, kind: input, shape index: {}]
  %s2 = inlined_call_operand.vmem [shape: f32[1,128], index: 2, kind: input, shape index: {}]
  %s3 = inlined_call_operand.vmem [shape: bf16[104,128], index: 3, kind: output, shape index: {}]
  %s4 = sld [smem:[#allocation0]]
  $region30: #{base_ctc_encoder_forward.3} parent=0
    _
  %s6 = ssub.s32 1, %s4
  %s7 = scalar_select 0, %s6, %s4
  // Predicated region
  $region2: #{base_ctc_encoder_forward.3} parent=0 // pred_check
    _
  $region3: #{base_ctc_encoder_forward.3} parent=0 // pred_check_branch
    %9 = sbr.rel (0) target = $region5
  $region4: #{base_ctc_encoder_forward.3} parent=0 // pred_region
    _
  $region5: #{base_ctc_encoder_forward.3} parent=0 // pred_fallthru
    _
  // Predicated region
  $region6: #{base_ctc_encoder_forward.3} parent=0 // pred_check
    _
  $region7: #{base_ctc_encoder_forward.3} parent=0 // pred_check_branch
    %11 = sbr.rel (0) target = $region9
  $region8: #{base_ctc_encoder_forward.3} parent=0 // pred_region
    _
  $region9: #{base_ctc_encoder_forward.3} parent=0 // pred_fallthru
    _
  // Predicated region
  $region10: #{base_ctc_encoder_forward.3} parent=0 // pred_check
    _
  $region11: #{base_ctc_encoder_forward.3} parent=0 // pred_check_branch
    %13 = sbr.rel (0) target = $region13
  $region12: #{base_ctc_encoder_forward.3} parent=0 // pred_region
    _
  $region13: #{base_ctc_encoder_forward.3} parent=0 // pred_fallthru
    _
  %p15 = scmp.eq.s32.totalorder 0, 0
  // Predicated region
  $region14: #{base_ctc_encoder_forward.3} parent=0 // pred_check
    %p16 = pneg %p15
  $region15: #{base_ctc_encoder_forward.3} parent=0 // pred_check_branch
    %18 = sbr.rel (%p16) target = $region17
  $region16: #{base_ctc_encoder_forward.3} parent=0 // pred_region
    %19 = vst [vmem:[#allocation2] sm:$0xff] 0.0
    %20 = vst [vmem:[#allocation2 + $0x8] sm:$0xff] 0.0
    %21 = vst [vmem:[#allocation2 + $0x10] sm:$0xff] 0.0
    %22 = vst [vmem:[#allocation2 + $0x18] sm:$0xff] 0.0
    %23 = vst [vmem:[#allocation2 + $0x20] sm:$0xff] 0.0
    %24 = vst [vmem:[#allocation2 + $0x28] sm:$0xff] 0.0
    %25 = vst [vmem:[#allocation2 + $0x30] sm:$0xff] 0.0
    %26 = vst [vmem:[#allocation2 + $0x38] sm:$0xff] 0.0
    %27 = vst [vmem:[#allocation2 + $0x40] sm:$0xff] 0.0
    %28 = vst [vmem:[#allocation2 + $0x48] sm:$0xff] 0.0
    %29 = vst [vmem:[#allocation2 + $0x50] sm:$0xff] 0.0
    %30 = vst [vmem:[#allocation2 + $0x58] sm:$0xff] 0.0
    %31 = vst [vmem:[#allocation2 + $0x60] sm:$0xff] 0.0
  $region17: #{base_ctc_encoder_forward.3} parent=0 // pred_fallthru
    _
  %v32 = vld [vmem:[#allocation2] sm:$0xff]
  %v33 = vld [vmem:[#allocation2 + $0x8] sm:$0xff]
  %v34 = vld [vmem:[#allocation2 + $0x10] sm:$0xff]
  %v35 = vld [vmem:[#allocation2 + $0x18] sm:$0xff]
  %v36 = vld [vmem:[#allocation2 + $0x20] sm:$0xff]
  %v37 = vld [vmem:[#allocation2 + $0x28] sm:$0xff]
  %v38 = vld [vmem:[#allocation2 + $0x30] sm:$0xff]
  %v39 = vld [vmem:[#allocation2 + $0x38] sm:$0xff]
  %v40 = vld [vmem:[#allocation2 + $0x40] sm:$0xff]
  %v41 = vld [vmem:[#allocation2 + $0x48] sm:$0xff]
  %v42 = vld [vmem:[#allocation2 + $0x50] sm:$0xff]
  %v43 = vld [vmem:[#allocation2 + $0x58] sm:$0xff]
  %v44 = vld [vmem:[#allocation2 + $0x60] sm:$0xff]
  %v45 = vld [vmem:[%s0] sm:$0xf]
  %v46 = vld [vmem:[%s0 + $0x4] sm:$0xf]
  %v47 = vld [vmem:[%s0 + $0x8] sm:$0xf]
  %v48 = vld [vmem:[%s0 + $0xc] sm:$0xf]
  %v49 = vld [vmem:[%s0 + $0x10] sm:$0xf]
  %v50 = vld [vmem:[%s0 + $0x14] sm:$0xf]
  %v51 = vld [vmem:[%s0 + $0x18] sm:$0xf]
  %v52 = vld [vmem:[%s0 + $0x1c] sm:$0xf]
  %v53 = vld [vmem:[%s0 + $0x20] sm:$0xf]
  %v54 = vld [vmem:[%s0 + $0x24] sm:$0xf]
  %v55 = vld [vmem:[%s0 + $0x28] sm:$0xf]
  %v56 = vld [vmem:[%s0 + $0x2c] sm:$0xf]
  %v57 = vld [vmem:[%s0 + $0x30] sm:$0xf]
  %v58 = vld [vmem:[%s1] sm:$0xf]
  %v59 = vld [vmem:[%s1 + $0x4] sm:$0x1]
  %v73 = vunpack.c.l.b16 %v45
  %v74 = vunpack.c.l.b16 %v46
  %v75 = vunpack.c.l.b16 %v47
  %v76 = vunpack.c.l.b16 %v48
  %v77 = vunpack.c.l.b16 %v49
  %v78 = vunpack.c.l.b16 %v50
  %v79 = vunpack.c.l.b16 %v51
  %v80 = vunpack.c.l.b16 %v52
  %v81 = vunpack.c.l.b16 %v53
  %v82 = vunpack.c.l.b16 %v54
  %v83 = vunpack.c.l.b16 %v55
  %v84 = vunpack.c.l.b16 %v56
  %v85 = vunpack.c.l.b16 %v57
  %v86 = vpack.c.b16 %v74, %v73
  %v87 = vpack.c.b16 %v76, %v75
  %v88 = vpack.c.b16 %v78, %v77
  %v89 = vpack.c.b16 %v80, %v79
  %v90 = vpack.c.b16 %v82, %v81
  %v91 = vpack.c.b16 %v84, %v83
  %v92 = vpack.c.b16 %v85, %v85
  %v95 = vunpack.c.l.b16 %v58
  %v96 = vunpack.c.l.b16 %v59
  %v97 = vpack.c.b16 %v96, %v95
  %vm98 = vcmask 72704
  %v100 = vsel %vm98, %v86, 0
  %v103 = vsel %vm98, %v87, 0
  %v106 = vsel %vm98, %v88, 0
  %v109 = vsel %vm98, %v89, 0
  %v112 = vsel %vm98, %v90, 0
  %v115 = vsel %vm98, %v91, 0
  %v118 = vsel %vm98, %v92, 0
  %vm120 = vcmask 1043456
  %vm121 = vcmask 1044480
  %v122 = vsel %vm120, 4294967295, 65535
  %v123 = vsel %vm121, %v122, 0
  %v125 = vand.u32 %v97, %v123
  %127 = vmatprep.subr.bf16.mxu0 0
  %128 = vmatpush1.bf16.msra.mxu0 %v125
  %129 = vmatprep.subr.bf16.mxu0 0
  %130 = vmatpush1.bf16.msra.mxu0 0
  %131 = vmatprep.subr.bf16.mxu0 0
  %132 = vmatpush1.bf16.msra.mxu0 0
  %133 = vmatprep.subr.bf16.mxu0 0
  %134 = vmatpush1.bf16.msra.mxu0 0
  %135 = vmatprep.subr.bf16.mxu0 0
  %136 = vmatpush1.bf16.msra.mxu0 0
  %137 = vmatprep.subr.bf16.mxu0 0
  %138 = vmatpush1.bf16.msra.mxu0 0
  %139 = vmatprep.subr.bf16.mxu0 0
  %140 = vmatpush1.bf16.msra.mxu0 0
  %141 = vmatprep.subr.bf16.mxu0 0
  %142 = vmatpush1.bf16.msra.mxu0 0
  %143 = vmatprep.subr.bf16.mxu0 0
  %144 = vmatpush1.bf16.msra.mxu0 0
  %145 = vmatprep.subr.bf16.mxu0 0
  %146 = vmatpush1.bf16.msra.mxu0 0
  %147 = vmatprep.subr.bf16.mxu0 0
  %148 = vmatpush1.bf16.msra.mxu0 0
  %149 = vmatprep.subr.bf16.mxu0 0
  %150 = vmatpush1.bf16.msra.mxu0 0
  %151 = vmatprep.subr.bf16.mxu0 0
  %152 = vmatpush1.bf16.msra.mxu0 0
  %153 = vmatprep.subr.bf16.mxu0 0
  %154 = vmatpush1.bf16.msra.mxu0 0
  %155 = vmatprep.subr.bf16.mxu0 0
  %156 = vmatpush1.bf16.msra.mxu0 0
  %157 = vmatprep.subr.bf16.mxu0 0
  %158 = vmatpush1.bf16.msra.mxu0 0
  %159 = vmatprep.mubr.bf16.mxu0 0
  %160 = vmatmul.mubr.bf16.gmra.mrb[0].mxu0 %v100
  %v161 = vpop.f32.mrb[0].mxu0
  %v162 = vadd.f32 0.0, %v161
  %v163 = vpop.f32.mrb[0].mxu0
  %v164 = vpop.f32.mrb[0].mxu0
  %v165 = vadd.f32 0.0, %v164
  %v166 = vpop.f32.mrb[0].mxu0
  %167 = vmatprep.mubr.bf16.mxu0 0
  %168 = vmatmul.mubr.bf16.gmra.mrb[0].mxu0 %v103
  %v169 = vpop.f32.mrb[0].mxu0
  %v170 = vadd.f32 0.0, %v169
  %v171 = vpop.f32.mrb[0].mxu0
  %v172 = vpop.f32.mrb[0].mxu0
  %v173 = vadd.f32 0.0, %v172
  %v174 = vpop.f32.mrb[0].mxu0
  %175 = vmatprep.mubr.bf16.mxu0 0
  %176 = vmatmul.mubr.bf16.gmra.mrb[0].mxu0 %v106
  %v177 = vpop.f32.mrb[0].mxu0
  %v178 = vadd.f32 0.0, %v177
  %v179 = vpop.f32.mrb[0].mxu0
  %v180 = vpop.f32.mrb[0].mxu0
  %v181 = vadd.f32 0.0, %v180
  %v182 = vpop.f32.mrb[0].mxu0
  %183 = vmatprep.mubr.bf16.mxu0 0
  %184 = vmatmul.mubr.bf16.gmra.mrb[0].mxu0 %v109
  %v185 = vpop.f32.mrb[0].mxu0
  %v186 = vadd.f32 0.0, %v185
  %v187 = vpop.f32.mrb[0].mxu0
  %v188 = vpop.f32.mrb[0].mxu0
  %v189 = vadd.f32 0.0, %v188
  %v190 = vpop.f32.mrb[0].mxu0
  %191 = vmatprep.mubr.bf16.mxu0 0
  %192 = vmatmul.mubr.bf16.gmra.mrb[0].mxu0 %v112
  %v193 = vpop.f32.mrb[0].mxu0
  %v194 = vadd.f32 0.0, %v193
  %v195 = vpop.f32.mrb[0].mxu0
  %v196 = vpop.f32.mrb[0].mxu0
  %v197 = vadd.f32 0.0, %v196
  %v198 = vpop.f32.mrb[0].mxu0
  %199 = vmatprep.mubr.bf16.mxu0 0
  %200 = vmatmul.mubr.bf16.gmra.mrb[0].mxu0 %v115
  %v201 = vpop.f32.mrb[0].mxu0
  %v202 = vadd.f32 0.0, %v201
  %v203 = vpop.f32.mrb[0].mxu0
  %v204 = vpop.f32.mrb[0].mxu0
  %v205 = vadd.f32 0.0, %v204
  %v206 = vpop.f32.mrb[0].mxu0
  %207 = vmatprep.mubr.bf16.mxu0 0
  %208 = vmatmul.mubr.bf16.gmra.mrb[0].mxu0 %v118
  %v209 = vpop.f32.mrb[0].mxu0
  %v210 = vadd.f32 0.0, %v209
  %v211 = vpop.f32.mrb[0].mxu0
  %v212 = vpop.f32.mrb[0].mxu0
  %v213 = vpop.f32.mrb[0].mxu0
  %214 = vdwg.mxu0
  %v215 = vadd.f32 %v32, %v162
  %v216 = vadd.f32 %v33, %v165
  %v217 = vadd.f32 %v34, %v170
  %v218 = vadd.f32 %v35, %v173
  %v219 = vadd.f32 %v36, %v178
  %v220 = vadd.f32 %v37, %v181
  %v221 = vadd.f32 %v38, %v186
  %v222 = vadd.f32 %v39, %v189
  %v223 = vadd.f32 %v40, %v194
  %v224 = vadd.f32 %v41, %v197
  %v225 = vadd.f32 %v42, %v202
  %v226 = vadd.f32 %v43, %v205
  %v227 = vadd.f32 %v44, %v210
  %228 = vst [vmem:[#allocation2] sm:$0xff] %v215
  %229 = vst [vmem:[#allocation2 + $0x8] sm:$0xff] %v216
  %230 = vst [vmem:[#allocation2 + $0x10] sm:$0xff] %v217
  %231 = vst [vmem:[#allocation2 + $0x18] sm:$0xff] %v218
  %232 = vst [vmem:[#allocation2 + $0x20] sm:$0xff] %v219
  %233 = vst [vmem:[#allocation2 + $0x28] sm:$0xff] %v220
  %234 = vst [vmem:[#allocation2 + $0x30] sm:$0xff] %v221
  %235 = vst [vmem:[#allocation2 + $0x38] sm:$0xff] %v222
  %236 = vst [vmem:[#allocation2 + $0x40] sm:$0xff] %v223
  %237 = vst [vmem:[#allocation2 + $0x48] sm:$0xff] %v224
  %238 = vst [vmem:[#allocation2 + $0x50] sm:$0xff] %v225
  %239 = vst [vmem:[#allocation2 + $0x58] sm:$0xff] %v226
  %240 = vst [vmem:[#allocation2 + $0x60] sm:$0xff] %v227
  // Predicated region
  $region18: #{base_ctc_encoder_forward.3} parent=0 // pred_check
    %p241 = pneg %p15
  $region19: #{base_ctc_encoder_forward.3} parent=0 // pred_check_branch
    %243 = sbr.rel (%p241) target = $region21
  $region20: #{base_ctc_encoder_forward.3} parent=0 // pred_region
    %v244 = vld [vmem:[#allocation2] sm:$0xff]
    %v245 = vld [vmem:[#allocation2 + $0x8] sm:$0xff]
    %v246 = vld [vmem:[#allocation2 + $0x10] sm:$0xff]
    %v247 = vld [vmem:[#allocation2 + $0x18] sm:$0xff]
    %v248 = vld [vmem:[#allocation2 + $0x20] sm:$0xff]
    %v249 = vld [vmem:[#allocation2 + $0x28] sm:$0xff]
    %v250 = vld [vmem:[#allocation2 + $0x30] sm:$0xff]
    %v251 = vld [vmem:[#allocation2 + $0x38] sm:$0xff]
    %v252 = vld [vmem:[#allocation2 + $0x40] sm:$0xff]
    %v253 = vld [vmem:[#allocation2 + $0x48] sm:$0xff]
    %v254 = vld [vmem:[#allocation2 + $0x50] sm:$0xff]
    %v255 = vld [vmem:[#allocation2 + $0x58] sm:$0xff]
    %v256 = vld [vmem:[#allocation2 + $0x60] sm:$0xff]
    %v257 = vld [vmem:[%s2] sm:$0x1]
    %v259 = vlaneseq
    %v260 = vshrl.u32 %v259, 7
    %v261 = vsub.s32 0, %v260
    %v262 = vrot.slane %v257, %v261
    %v264 = vadd.f32 %v244, %v262
    %v265 = vadd.f32 %v245, %v262
    %v266 = vadd.f32 %v246, %v262
    %v267 = vadd.f32 %v247, %v262
    %v268 = vadd.f32 %v248, %v262
    %v269 = vadd.f32 %v249, %v262
    %v270 = vadd.f32 %v250, %v262
    %v271 = vadd.f32 %v251, %v262
    %v272 = vadd.f32 %v252, %v262
    %v273 = vadd.f32 %v253, %v262
    %v274 = vadd.f32 %v254, %v262
    %v275 = vadd.f32 %v255, %v262
    %v276 = vadd.f32 %v256, %v262
    %v277 = vmax.f32 %v264, 0.0
    %v278 = vmax.f32 %v265, 0.0
    %v279 = vmax.f32 %v266, 0.0
    %v280 = vmax.f32 %v267, 0.0
    %v281 = vmax.f32 %v268, 0.0
    %v282 = vmax.f32 %v269, 0.0
    %v283 = vmax.f32 %v270, 0.0
    %v284 = vmax.f32 %v271, 0.0
    %v285 = vmax.f32 %v272, 0.0
    %v286 = vmax.f32 %v273, 0.0
    %v287 = vmax.f32 %v274, 0.0
    %v288 = vmax.f32 %v275, 0.0
    %v289 = vmax.f32 %v276, 0.0
    %v290 = vpack.c.bf16 %v278, %v277
    %v291 = vpack.c.bf16 %v280, %v279
    %v292 = vpack.c.bf16 %v282, %v281
    %v293 = vpack.c.bf16 %v284, %v283
    %v294 = vpack.c.bf16 %v286, %v285
    %v295 = vpack.c.bf16 %v288, %v287
    %v296 = vpack.c.bf16 %v289, %v289
    %v304 = vunpack.c.l.b16 %v290
    %v305 = vunpack.c.h.b16 %v290
    %v306 = vunpack.c.l.b16 %v291
    %v307 = vunpack.c.h.b16 %v291
    %v308 = vunpack.c.l.b16 %v292
    %v309 = vunpack.c.h.b16 %v292
    %v310 = vunpack.c.l.b16 %v293
    %v311 = vunpack.c.h.b16 %v293
    %v312 = vunpack.c.l.b16 %v294
    %v313 = vunpack.c.h.b16 %v294
    %v314 = vunpack.c.l.b16 %v295
    %v315 = vunpack.c.h.b16 %v295
    %v316 = vunpack.c.l.b16 %v296
    %v317 = vpack.c.b16 %v304, %v304
    %v318 = vpack.c.b16 %v305, %v305
    %v319 = vpack.c.b16 %v306, %v306
    %v320 = vpack.c.b16 %v307, %v307
    %v321 = vpack.c.b16 %v308, %v308
    %v322 = vpack.c.b16 %v309, %v309
    %v323 = vpack.c.b16 %v310, %v310
    %v324 = vpack.c.b16 %v311, %v311
    %v325 = vpack.c.b16 %v312, %v312
    %v326 = vpack.c.b16 %v313, %v313
    %v327 = vpack.c.b16 %v314, %v314
    %v328 = vpack.c.b16 %v315, %v315
    %v329 = vpack.c.b16 %v316, %v316
    %343 = vst [vmem:[%s3] sm:$0xf] %v317
    %344 = vst [vmem:[%s3 + $0x4] sm:$0xf] %v318
    %345 = vst [vmem:[%s3 + $0x8] sm:$0xf] %v319
    %346 = vst [vmem:[%s3 + $0xc] sm:$0xf] %v320
    %347 = vst [vmem:[%s3 + $0x10] sm:$0xf] %v321
    %348 = vst [vmem:[%s3 + $0x14] sm:$0xf] %v322
    %349 = vst [vmem:[%s3 + $0x18] sm:$0xf] %v323
    %350 = vst [vmem:[%s3 + $0x1c] sm:$0xf] %v324
    %351 = vst [vmem:[%s3 + $0x20] sm:$0xf] %v325
    %352 = vst [vmem:[%s3 + $0x24] sm:$0xf] %v326
    %353 = vst [vmem:[%s3 + $0x28] sm:$0xf] %v327
    %354 = vst [vmem:[%s3 + $0x2c] sm:$0xf] %v328
    %355 = vst [vmem:[%s3 + $0x30] sm:$0xf] %v329
  $region21: #{base_ctc_encoder_forward.3} parent=0 // pred_fallthru
    _
  // Predicated region
  $region22: #{base_ctc_encoder_forward.3} parent=0 // pred_check
    _
  $region23: #{base_ctc_encoder_forward.3} parent=0 // pred_check_branch
    %357 = sbr.rel (0) target = $region25
  $region24: #{base_ctc_encoder_forward.3} parent=0 // pred_region
    _
  $region25: #{base_ctc_encoder_forward.3} parent=0 // pred_fallthru
    _
  // Predicated region
  $region26: #{base_ctc_encoder_forward.3} parent=0 // pred_check
    _
  $region27: #{base_ctc_encoder_forward.3} parent=0 // pred_check_branch
    %359 = sbr.rel (0) target = $region29
  $region28: #{base_ctc_encoder_forward.3} parent=0 // pred_region
    _
  $region29: #{base_ctc_encoder_forward.3} parent=0 // pred_fallthru
    _

// kernel: base_ctc_encoder_forward.4
$region0: #{base_ctc_encoder_forward.4}
  #allocation0 [shape = 'u32[]', space=smem, size = 0x4, offset = 0x4, fixed_abs, tag = 'smem constant byte address 0x4 - core index']
  #allocation1 [shape = 'u32[144,128]{1,0:T(1,128)}', space=vmem, size = 0x12000, scoped, tag = 'internal scratch']
  #allocation2 [shape = 'f32[24,128]{1,0:T(8,128)}', space=vmem, size = 0x3000, scoped, tag = 'scratch operand']
  %s0 = inlined_call_operand.vmem [shape: bf16[24,288], index: 0, kind: input, shape index: {}]
  %s1 = inlined_call_operand.vmem [shape: bf16[288,128], index: 1, kind: input, shape index: {}]
  %s2 = inlined_call_operand.vmem [shape: f32[1,128], index: 2, kind: input, shape index: {}]
  %s3 = inlined_call_operand.vmem [shape: bf16[24,128], index: 3, kind: output, shape index: {}]
  %s4 = sld [smem:[#allocation0]]
  $region30: #{base_ctc_encoder_forward.4} parent=0
    _
  %s6 = ssub.s32 1, %s4
  %s7 = scalar_select 0, %s6, %s4
  // Predicated region
  $region2: #{base_ctc_encoder_forward.4} parent=0 // pred_check
    _
  $region3: #{base_ctc_encoder_forward.4} parent=0 // pred_check_branch
    %9 = sbr.rel (0) target = $region5
  $region4: #{base_ctc_encoder_forward.4} parent=0 // pred_region
    _
  $region5: #{base_ctc_encoder_forward.4} parent=0 // pred_fallthru
    _
  // Predicated region
  $region6: #{base_ctc_encoder_forward.4} parent=0 // pred_check
    _
  $region7: #{base_ctc_encoder_forward.4} parent=0 // pred_check_branch
    %11 = sbr.rel (0) target = $region9
  $region8: #{base_ctc_encoder_forward.4} parent=0 // pred_region
    _
  $region9: #{base_ctc_encoder_forward.4} parent=0 // pred_fallthru
    _
  // Predicated region
  $region10: #{base_ctc_encoder_forward.4} parent=0 // pred_check
    _
  $region11: #{base_ctc_encoder_forward.4} parent=0 // pred_check_branch
    %13 = sbr.rel (0) target = $region13
  $region12: #{base_ctc_encoder_forward.4} parent=0 // pred_region
    _
  $region13: #{base_ctc_encoder_forward.4} parent=0 // pred_fallthru
    _
  %p15 = scmp.eq.s32.totalorder 0, 0
  // Predicated region
  $region14: #{base_ctc_encoder_forward.4} parent=0 // pred_check
    %p16 = pneg %p15
  $region15: #{base_ctc_encoder_forward.4} parent=0 // pred_check_branch
    %18 = sbr.rel (%p16) target = $region17
  $region16: #{base_ctc_encoder_forward.4} parent=0 // pred_region
    %19 = vst [vmem:[#allocation2] sm:$0xff] 0.0
    %20 = vst [vmem:[#allocation2 + $0x8] sm:$0xff] 0.0
    %21 = vst [vmem:[#allocation2 + $0x10] sm:$0xff] 0.0
  $region17: #{base_ctc_encoder_forward.4} parent=0 // pred_fallthru
    _
  %v22 = vld [vmem:[#allocation2] sm:$0xff]
  %v23 = vld [vmem:[#allocation2 + $0x8] sm:$0xff]
  %v24 = vld [vmem:[#allocation2 + $0x10] sm:$0xff]
  %v25 = vld [vmem:[%s0] sm:$0xff]
  %v26 = vld [vmem:[%s0 + $0x8] sm:$0xf]
  %v27 = vld [vmem:[%s0 + $0xc] sm:$0xff]
  %v28 = vld [vmem:[%s0 + $0x14] sm:$0xf]
  %v29 = vld [vmem:[%s0 + $0x18] sm:$0xff]
  %v30 = vld [vmem:[%s0 + $0x20] sm:$0xf]
  %v31 = vld [vmem:[%s1] sm:$0xf]
  %v32 = vld [vmem:[%s1 + $0x4] sm:$0xf]
  %v33 = vld [vmem:[%s1 + $0x8] sm:$0xf]
  %v34 = vld [vmem:[%s1 + $0xc] sm:$0xf]
  %v35 = vld [vmem:[%s1 + $0x10] sm:$0xf]
  %v36 = vld [vmem:[%s1 + $0x14] sm:$0xf]
  %v37 = vld [vmem:[%s1 + $0x18] sm:$0xf]
  %v38 = vld [vmem:[%s1 + $0x1c] sm:$0xf]
  %v39 = vld [vmem:[%s1 + $0x20] sm:$0xf]
  %v40 = vld [vmem:[%s1 + $0x24] sm:$0xf]
  %v41 = vld [vmem:[%s1 + $0x28] sm:$0xf]
  %v42 = vld [vmem:[%s1 + $0x2c] sm:$0xf]
  %v43 = vld [vmem:[%s1 + $0x30] sm:$0xf]
  %v44 = vld [vmem:[%s1 + $0x34] sm:$0xf]
  %v45 = vld [vmem:[%s1 + $0x38] sm:$0xf]
  %v46 = vld [vmem:[%s1 + $0x3c] sm:$0xf]
  %v47 = vld [vmem:[%s1 + $0x40] sm:$0xf]
  %v48 = vld [vmem:[%s1 + $0x44] sm:$0xf]
  %v49 = vld [vmem:[%s1 + $0x48] sm:$0xf]
  %v50 = vld [vmem:[%s1 + $0x4c] sm:$0xf]
  %v51 = vld [vmem:[%s1 + $0x50] sm:$0xf]
  %v52 = vld [vmem:[%s1 + $0x54] sm:$0xf]
  %v53 = vld [vmem:[%s1 + $0x58] sm:$0xf]
  %v54 = vld [vmem:[%s1 + $0x5c] sm:$0xf]
  %v55 = vld [vmem:[%s1 + $0x60] sm:$0xf]
  %v56 = vld [vmem:[%s1 + $0x64] sm:$0xf]
  %v57 = vld [vmem:[%s1 + $0x68] sm:$0xf]
  %v58 = vld [vmem:[%s1 + $0x6c] sm:$0xf]
  %v59 = vld [vmem:[%s1 + $0x70] sm:$0xf]
  %v60 = vld [vmem:[%s1 + $0x74] sm:$0xf]
  %v61 = vld [vmem:[%s1 + $0x78] sm:$0xf]
  %v62 = vld [vmem:[%s1 + $0x7c] sm:$0xf]
  %v63 = vld [vmem:[%s1 + $0x80] sm:$0xf]
  %v64 = vld [vmem:[%s1 + $0x84] sm:$0xf]
  %v65 = vld [vmem:[%s1 + $0x88] sm:$0xf]
  %v66 = vld [vmem:[%s1 + $0x8c] sm:$0xf]
  %v73 = vunpack.c.l.b16 %v25
  %v74 = vunpack.c.h.b16 %v25
  %v75 = vunpack.c.l.b16 %v26
  %v76 = vunpack.c.l.b16 %v27
  %v77 = vunpack.c.h.b16 %v27
  %v78 = vunpack.c.l.b16 %v28
  %v79 = vunpack.c.l.b16 %v29
  %v80 = vunpack.c.h.b16 %v29
  %v81 = vunpack.c.l.b16 %v30
  %v82 = vpack.c.b16 %v76, %v73
  %v83 = vpack.c.b16 %v77, %v74
  %v84 = vpack.c.b16 %v78, %v75
  %v85 = vpack.c.b16 %v79, %v79
  %v86 = vpack.c.b16 %v80, %v80
  %v87 = vpack.c.b16 %v81, %v81
  %v128 = vunpack.c.l.b16 %v31
  %v129 = vunpack.c.l.b16 %v32
  %v130 = vunpack.c.l.b16 %v33
  %v131 = vunpack.c.l.b16 %v34
  %v132 = vunpack.c.l.b16 %v35
  %v133 = vunpack.c.l.b16 %v36
  %v134 = vunpack.c.l.b16 %v37
  %v135 = vunpack.c.l.b16 %v38
  %v136 = vunpack.c.l.b16 %v39
  %v137 = vunpack.c.l.b16 %v40
  %v138 = vunpack.c.l.b16 %v41
  %v139 = vunpack.c.l.b16 %v42
  %v140 = vunpack.c.l.b16 %v43
  %v141 = vunpack.c.l.b16 %v44
  %v142 = vunpack.c.l.b16 %v45
  %v143 = vunpack.c.l.b16 %v46
  %v144 = vunpack.c.l.b16 %v47
  %v145 = vunpack.c.l.b16 %v48
  %v146 = vunpack.c.l.b16 %v49
  %v147 = vunpack.c.l.b16 %v50
  %v148 = vunpack.c.l.b16 %v51
  %v149 = vunpack.c.l.b16 %v52
  %v150 = vunpack.c.l.b16 %v53
  %v151 = vunpack.c.l.b16 %v54
  %v152 = vunpack.c.l.b16 %v55
  %v153 = vunpack.c.l.b16 %v56
  %v154 = vunpack.c.l.b16 %v57
  %v155 = vunpack.c.l.b16 %v58
  %v156 = vunpack.c.l.b16 %v59
  %v157 = vunpack.c.l.b16 %v60
  %v158 = vunpack.c.l.b16 %v61
  %v159 = vunpack.c.l.b16 %v62
  %v160 = vunpack.c.l.b16 %v63
  %v161 = vunpack.c.l.b16 %v64
  %v162 = vunpack.c.l.b16 %v65
  %v163 = vunpack.c.l.b16 %v66
  %v164 = vpack.c.b16 %v129, %v128
  %v165 = vpack.c.b16 %v131, %v130
  %v166 = vpack.c.b16 %v133, %v132
  %v167 = vpack.c.b16 %v135, %v134
  %v168 = vpack.c.b16 %v137, %v136
  %v169 = vpack.c.b16 %v139, %v138
  %v170 = vpack.c.b16 %v141, %v140
  %v171 = vpack.c.b16 %v143, %v142
  %v172 = vpack.c.b16 %v145, %v144
  %v173 = vpack.c.b16 %v147, %v146
  %v174 = vpack.c.b16 %v149, %v148
  %v175 = vpack.c.b16 %v151, %v150
  %v176 = vpack.c.b16 %v153, %v152
  %v177 = vpack.c.b16 %v155, %v154
  %v178 = vpack.c.b16 %v157, %v156
  %v179 = vpack.c.b16 %v159, %v158
  %v180 = vpack.c.b16 %v161, %v160
  %v181 = vpack.c.b16 %v163, %v162
  %vm200 = vcmask 261120
  %v202 = vsel %vm200, %v84, 0
  %v205 = vsel %vm200, %v87, 0
  %207 = vmatprep.subr.bf16.mxu0 0
  %208 = vmatpush1.bf16.msra.mxu0 %v164
  %209 = vmatprep.subr.bf16.mxu0 0
  %210 = vmatpush1.bf16.msra.mxu0 %v165
  %211 = vmatprep.subr.bf16.mxu0 0
  %212 = vmatpush1.bf16.msra.mxu0 %v166
  %213 = vmatprep.subr.bf16.mxu0 0
  %214 = vmatpush1.bf16.msra.mxu0 %v167
  %215 = vmatprep.subr.bf16.mxu0 0
  %216 = vmatpush1.bf16.msra.mxu0 %v168
  %217 = vmatprep.subr.bf16.mxu0 0
  %218 = vmatpush1.bf16.msra.mxu0 %v169
  %219 = vmatprep.subr.bf16.mxu0 0
  %220 = vmatpush1.bf16.msra.mxu0 %v170
  %221 = vmatprep.subr.bf16.mxu0 0
  %222 = vmatpush1.bf16.msra.mxu0 %v171
  %223 = vmatprep.subr.bf16.mxu0 0
  %224 = vmatpush1.bf16.msra.mxu0 %v172
  %225 = vmatprep.subr.bf16.mxu0 0
  %226 = vmatpush1.bf16.msra.mxu0 %v173
  %227 = vmatprep.subr.bf16.mxu0 0
  %228 = vmatpush1.bf16.msra.mxu0 %v174
  %229 = vmatprep.subr.bf16.mxu0 0
  %230 = vmatpush1.bf16.msra.mxu0 %v175
  %231 = vmatprep.subr.bf16.mxu0 0
  %232 = vmatpush1.bf16.msra.mxu0 %v176
  %233 = vmatprep.subr.bf16.mxu0 0
  %234 = vmatpush1.bf16.msra.mxu0 %v177
  %235 = vmatprep.subr.bf16.mxu0 0
  %236 = vmatpush1.bf16.msra.mxu0 %v178
  %237 = vmatprep.subr.bf16.mxu0 0
  %238 = vmatpush1.bf16.msra.mxu0 %v179
  %239 = vmatprep.mubr.bf16.mxu0 %v83
  %240 = vmatmul.mubr.bf16.gmra.mrb[0].mxu0 %v82
  %v241 = vpop.f32.mrb[0].mxu0
  %v242 = vadd.f32 0.0, %v241
  %v243 = vpop.f32.mrb[0].mxu0
  %v244 = vpop.f32.mrb[0].mxu0
  %v245 = vadd.f32 0.0, %v244
  %v246 = vpop.f32.mrb[0].mxu0
  %247 = vmatprep.mubr.bf16.mxu0 %v86
  %248 = vmatmul.mubr.bf16.gmra.mrb[0].mxu0 %v85
  %v249 = vpop.f32.mrb[0].mxu0
  %v250 = vadd.f32 0.0, %v249
  %v251 = vpop.f32.mrb[0].mxu0
  %v252 = vpop.f32.mrb[0].mxu0
  %v253 = vpop.f32.mrb[0].mxu0
  %254 = vdwg.mxu0
  %255 = vmatprep.subr.bf16.mxu0 0
  %256 = vmatpush1.bf16.msra.mxu0 %v180
  %257 = vmatprep.subr.bf16.mxu0 0
  %258 = vmatpush1.bf16.msra.mxu0 %v181
  %259 = vmatprep.subr.bf16.mxu0 0
  %260 = vmatpush1.bf16.msra.mxu0 0
  %261 = vmatprep.subr.bf16.mxu0 0
  %262 = vmatpush1.bf16.msra.mxu0 0
  %263 = vmatprep.subr.bf16.mxu0 0
  %264 = vmatpush1.bf16.msra.mxu0 0
  %265 = vmatprep.subr.bf16.mxu0 0
  %266 = vmatpush1.bf16.msra.mxu0 0
  %267 = vmatprep.subr.bf16.mxu0 0
  %268 = vmatpush1.bf16.msra.mxu0 0
  %269 = vmatprep.subr.bf16.mxu0 0
  %270 = vmatpush1.bf16.msra.mxu0 0
  %271 = vmatprep.subr.bf16.mxu0 0
  %272 = vmatpush1.bf16.msra.mxu0 0
  %273 = vmatprep.subr.bf16.mxu0 0
  %274 = vmatpush1.bf16.msra.mxu0 0
  %275 = vmatprep.subr.bf16.mxu0 0
  %276 = vmatpush1.bf16.msra.mxu0 0
  %277 = vmatprep.subr.bf16.mxu0 0
  %278 = vmatpush1.bf16.msra.mxu0 0
  %279 = vmatprep.subr.bf16.mxu0 0
  %280 = vmatpush1.bf16.msra.mxu0 0
  %281 = vmatprep.subr.bf16.mxu0 0
  %282 = vmatpush1.bf16.msra.mxu0 0
  %283 = vmatprep.subr.bf16.mxu0 0
  %284 = vmatpush1.bf16.msra.mxu0 0
  %285 = vmatprep.subr.bf16.mxu0 0
  %286 = vmatpush1.bf16.msra.mxu0 0
  %287 = vmatprep.mubr.bf16.mxu0 0
  %288 = vmatmul.mubr.bf16.gmra.mrb[0].mxu0 %v202
  %v289 = vpop.f32.mrb[0].mxu0
  %v290 = vadd.f32 %v242, %v289
  %v291 = vpop.f32.mrb[0].mxu0
  %v292 = vpop.f32.mrb[0].mxu0
  %v293 = vadd.f32 %v245, %v292
  %v294 = vpop.f32.mrb[0].mxu0
  %295 = vmatprep.mubr.bf16.mxu0 0
  %296 = vmatmul.mubr.bf16.gmra.mrb[0].mxu0 %v205
  %v297 = vpop.f32.mrb[0].mxu0
  %v298 = vadd.f32 %v250, %v297
  %v299 = vpop.f32.mrb[0].mxu0
  %v300 = vpop.f32.mrb[0].mxu0
  %v301 = vpop.f32.mrb[0].mxu0
  %302 = vdwg.mxu0
  %v303 = vadd.f32 %v22, %v290
  %v304 = vadd.f32 %v23, %v293
  %v305 = vadd.f32 %v24, %v298
  %306 = vst [vmem:[#allocation2] sm:$0xff] %v303
  %307 = vst [vmem:[#allocation2 + $0x8] sm:$0xff] %v304
  %308 = vst [vmem:[#allocation2 + $0x10] sm:$0xff] %v305
  // Predicated region
  $region18: #{base_ctc_encoder_forward.4} parent=0 // pred_check
    %p309 = pneg %p15
  $region19: #{base_ctc_encoder_forward.4} parent=0 // pred_check_branch
    %311 = sbr.rel (%p309) target = $region21
  $region20: #{base_ctc_encoder_forward.4} parent=0 // pred_region
    %v312 = vld [vmem:[#allocation2] sm:$0xff]
    %v313 = vld [vmem:[#allocation2 + $0x8] sm:$0xff]
    %v314 = vld [vmem:[#allocation2 + $0x10] sm:$0xff]
    %v315 = vld [vmem:[%s2] sm:$0x1]
    %v317 = vlaneseq
    %v318 = vshrl.u32 %v317, 7
    %v319 = vsub.s32 0, %v318
    %v320 = vrot.slane %v315, %v319
    %v322 = vadd.f32 %v312, %v320
    %v323 = vadd.f32 %v313, %v320
    %v324 = vadd.f32 %v314, %v320
    %v325 = vmax.f32 %v322, 0.0
    %v326 = vmax.f32 %v323, 0.0
    %v327 = vmax.f32 %v324, 0.0
    %v328 = vpack.c.bf16 %v326, %v325
    %v329 = vpack.c.bf16 %v327, %v327
    %v332 = vunpack.c.l.b16 %v328
    %v333 = vunpack.c.h.b16 %v328
    %v334 = vunpack.c.l.b16 %v329
    %v335 = vpack.c.b16 %v332, %v332
    %v336 = vpack.c.b16 %v333, %v333
    %v337 = vpack.c.b16 %v334, %v334
    %341 = vst [vmem:[%s3] sm:$0xf] %v335
    %342 = vst [vmem:[%s3 + $0x4] sm:$0xf] %v336
    %343 = vst [vmem:[%s3 + $0x8] sm:$0xf] %v337
  $region21: #{base_ctc_encoder_forward.4} parent=0 // pred_fallthru
    _
  // Predicated region
  $region22: #{base_ctc_encoder_forward.4} parent=0 // pred_check
    _
  $region23: #{base_ctc_encoder_forward.4} parent=0 // pred_check_branch
    %345 = sbr.rel (0) target = $region25
  $region24: #{base_ctc_encoder_forward.4} parent=0 // pred_region
    _
  $region25: #{base_ctc_encoder_forward.4} parent=0 // pred_fallthru
    _
  // Predicated region
  $region26: #{base_ctc_encoder_forward.4} parent=0 // pred_check
    _
  $region27: #{base_ctc_encoder_forward.4} parent=0 // pred_check_branch
    %347 = sbr.rel (0) target = $region29
  $region28: #{base_ctc_encoder_forward.4} parent=0 // pred_region
    _
  $region29: #{base_ctc_encoder_forward.4} parent=0 // pred_fallthru
    _

// kernel: base_ctc_encoder_forward.5
$region0: #{base_ctc_encoder_forward.5}
  #allocation0 [shape = 'u32[]', space=smem, size = 0x4, offset = 0x4, fixed_abs, tag = 'smem constant byte address 0x4 - core index']
  #allocation1 [shape = 'u32[144,128]{1,0:T(1,128)}', space=vmem, size = 0x12000, scoped, tag = 'internal scratch']
  #allocation2 [shape = 'f32[8,32]{1,0:T(8,128)}', space=vmem, size = 0x1000, scoped, tag = 'scratch operand']
  %s0 = inlined_call_operand.vmem [shape: bf16[8,96], index: 0, kind: input, shape index: {}]
  %s1 = inlined_call_operand.vmem [shape: bf16[96,32], index: 1, kind: input, shape index: {}]
  %s2 = inlined_call_operand.vmem [shape: f32[1,32], index: 2, kind: input, shape index: {}]
  %s3 = inlined_call_operand.vmem [shape: f32[1,32], index: 3, kind: input, shape index: {}]
  %s4 = inlined_call_operand.vmem [shape: f32[1,32], index: 4, kind: input, shape index: {}]
  %s5 = inlined_call_operand.vmem [shape: bf16[32,128], index: 5, kind: input, shape index: {}]
  %s6 = inlined_call_operand.vmem [shape: f32[1,128], index: 6, kind: input, shape index: {}]
  %s7 = inlined_call_operand.vmem [shape: f32[8,32], index: 7, kind: output, shape index: {0}]
  %s8 = inlined_call_operand.vmem [shape: f32[8,128], index: 8, kind: output, shape index: {1}]
  %9 = xla_tuple %s7, %s8
  %s10 = sld [smem:[#allocation0]]
  $region54: #{base_ctc_encoder_forward.5} parent=0
    _
  %s12 = ssub.s32 1, %s10
  %s13 = scalar_select 0, %s12, %s10
  // Predicated region
  $region2: #{base_ctc_encoder_forward.5} parent=0 // pred_check
    _
  $region3: #{base_ctc_encoder_forward.5} parent=0 // pred_check_branch
    %15 = sbr.rel (0) target = $region5
  $region4: #{base_ctc_encoder_forward.5} parent=0 // pred_region
    _
  $region5: #{base_ctc_encoder_forward.5} parent=0 // pred_fallthru
    _
  // Predicated region
  $region6: #{base_ctc_encoder_forward.5} parent=0 // pred_check
    _
  $region7: #{base_ctc_encoder_forward.5} parent=0 // pred_check_branch
    %17 = sbr.rel (0) target = $region9
  $region8: #{base_ctc_encoder_forward.5} parent=0 // pred_region
    _
  $region9: #{base_ctc_encoder_forward.5} parent=0 // pred_fallthru
    _
  // Predicated region
  $region10: #{base_ctc_encoder_forward.5} parent=0 // pred_check
    _
  $region11: #{base_ctc_encoder_forward.5} parent=0 // pred_check_branch
    %19 = sbr.rel (0) target = $region13
  $region12: #{base_ctc_encoder_forward.5} parent=0 // pred_region
    _
  $region13: #{base_ctc_encoder_forward.5} parent=0 // pred_fallthru
    _
  // Predicated region
  $region14: #{base_ctc_encoder_forward.5} parent=0 // pred_check
    _
  $region15: #{base_ctc_encoder_forward.5} parent=0 // pred_check_branch
    %21 = sbr.rel (0) target = $region17
  $region16: #{base_ctc_encoder_forward.5} parent=0 // pred_region
    _
  $region17: #{base_ctc_encoder_forward.5} parent=0 // pred_fallthru
    _
  // Predicated region
  $region18: #{base_ctc_encoder_forward.5} parent=0 // pred_check
    _
  $region19: #{base_ctc_encoder_forward.5} parent=0 // pred_check_branch
    %23 = sbr.rel (0) target = $region21
  $region20: #{base_ctc_encoder_forward.5} parent=0 // pred_region
    _
  $region21: #{base_ctc_encoder_forward.5} parent=0 // pred_fallthru
    _
  // Predicated region
  $region22: #{base_ctc_encoder_forward.5} parent=0 // pred_check
    _
  $region23: #{base_ctc_encoder_forward.5} parent=0 // pred_check_branch
    %25 = sbr.rel (0) target = $region25
  $region24: #{base_ctc_encoder_forward.5} parent=0 // pred_region
    _
  $region25: #{base_ctc_encoder_forward.5} parent=0 // pred_fallthru
    _
  // Predicated region
  $region26: #{base_ctc_encoder_forward.5} parent=0 // pred_check
    _
  $region27: #{base_ctc_encoder_forward.5} parent=0 // pred_check_branch
    %27 = sbr.rel (0) target = $region29
  $region28: #{base_ctc_encoder_forward.5} parent=0 // pred_region
    _
  $region29: #{base_ctc_encoder_forward.5} parent=0 // pred_fallthru
    _
  %p29 = scmp.eq.s32.totalorder 0, 0
  // Predicated region
  $region30: #{base_ctc_encoder_forward.5} parent=0 // pred_check
    %p30 = pneg %p29
  $region31: #{base_ctc_encoder_forward.5} parent=0 // pred_check_branch
    %32 = sbr.rel (%p30) target = $region33
  $region32: #{base_ctc_encoder_forward.5} parent=0 // pred_region
    %vm33 = vcmask 261120
    %34 = vst.msk [vmem:[#allocation2] sm:$0xff] %vm33, 0.0
  $region33: #{base_ctc_encoder_forward.5} parent=0 // pred_fallthru
    _
  %v35 = vld [vmem:[#allocation2] sm:$0xff]
  %v36 = vld [vmem:[%s0] sm:$0xf]
  %v37 = vld [vmem:[%s1] sm:$0xf]
  %v38 = vld [vmem:[%s1 + $0x4] sm:$0xf]
  %v39 = vld [vmem:[%s1 + $0x8] sm:$0xf]
  %v40 = vld [vmem:[%s1 + $0xc] sm:$0xf]
  %v41 = vld [vmem:[%s1 + $0x10] sm:$0xf]
  %v42 = vld [vmem:[%s1 + $0x14] sm:$0xf]
  %v43 = vld [vmem:[%s1 + $0x18] sm:$0xf]
  %v44 = vld [vmem:[%s1 + $0x1c] sm:$0xf]
  %v45 = vld [vmem:[%s1 + $0x20] sm:$0xf]
  %v46 = vld [vmem:[%s1 + $0x24] sm:$0xf]
  %v47 = vld [vmem:[%s1 + $0x28] sm:$0xf]
  %v48 = vld [vmem:[%s1 + $0x2c] sm:$0xf]
  %v61 = vunpack.c.l.b16 %v37
  %v62 = vunpack.c.l.b16 %v38
  %v63 = vunpack.c.l.b16 %v39
  %v64 = vunpack.c.l.b16 %v40
  %v65 = vunpack.c.l.b16 %v41
  %v66 = vunpack.c.l.b16 %v42
  %v67 = vunpack.c.l.b16 %v43
  %v68 = vunpack.c.l.b16 %v44
  %v69 = vunpack.c.l.b16 %v45
  %v70 = vunpack.c.l.b16 %v46
  %v71 = vunpack.c.l.b16 %v47
  %v72 = vunpack.c.l.b16 %v48
  %v73 = vpack.c.b16 %v62, %v61
  %v74 = vpack.c.b16 %v64, %v63
  %v75 = vpack.c.b16 %v66, %v65
  %v76 = vpack.c.b16 %v68, %v67
  %v77 = vpack.c.b16 %v70, %v69
  %v78 = vpack.c.b16 %v72, %v71
  %vm85 = vcmask 785408
  %v87 = vsel %vm85, %v36, 0
  %89 = vmatprep.subr.bf16.mxu0 0
  %90 = vmatpush1.bf16.msra.mxu0 %v73
  %91 = vmatprep.subr.bf16.mxu0 0
  %92 = vmatpush1.bf16.msra.mxu0 %v74
  %93 = vmatprep.subr.bf16.mxu0 0
  %94 = vmatpush1.bf16.msra.mxu0 %v75
  %95 = vmatprep.subr.bf16.mxu0 0
  %96 = vmatpush1.bf16.msra.mxu0 %v76
  %97 = vmatprep.subr.bf16.mxu0 0
  %98 = vmatpush1.bf16.msra.mxu0 %v77
  %99 = vmatprep.subr.bf16.mxu0 0
  %100 = vmatpush1.bf16.msra.mxu0 %v78
  %101 = vmatprep.subr.bf16.mxu0 0
  %102 = vmatpush1.bf16.msra.mxu0 0
  %103 = vmatprep.subr.bf16.mxu0 0
  %104 = vmatpush1.bf16.msra.mxu0 0
  %105 = vmatprep.subr.bf16.mxu0 0
  %106 = vmatpush1.bf16.msra.mxu0 0
  %107 = vmatprep.subr.bf16.mxu0 0
  %108 = vmatpush1.bf16.msra.mxu0 0
  %109 = vmatprep.subr.bf16.mxu0 0
  %110 = vmatpush1.bf16.msra.mxu0 0
  %111 = vmatprep.subr.bf16.mxu0 0
  %112 = vmatpush1.bf16.msra.mxu0 0
  %113 = vmatprep.subr.bf16.mxu0 0
  %114 = vmatpush1.bf16.msra.mxu0 0
  %115 = vmatprep.subr.bf16.mxu0 0
  %116 = vmatpush1.bf16.msra.mxu0 0
  %117 = vmatprep.subr.bf16.mxu0 0
  %118 = vmatpush1.bf16.msra.mxu0 0
  %119 = vmatprep.subr.bf16.mxu0 0
  %120 = vmatpush1.bf16.msra.mxu0 0
  %121 = vmatprep.mubr.bf16.mxu0 0
  %122 = vmatmul.mubr.bf16.gmra.mrb[0].mxu0 %v87
  %v123 = vpop.f32.mrb[0].mxu0
  %v124 = vadd.f32 0.0, %v123
  %v125 = vpop.f32.mrb[0].mxu0
  %v126 = vpop.f32.mrb[0].mxu0
  %v127 = vpop.f32.mrb[0].mxu0
  %128 = vdwg.mxu0
  %v129 = vadd.f32 %v35, %v124
  %vm130 = vcmask 261120
  %131 = vst.msk [vmem:[#allocation2] sm:$0xff] %vm130, %v129
  // Predicated region
  $region34: #{base_ctc_encoder_forward.5} parent=0 // pred_check
    %p132 = pneg %p29
  $region35: #{base_ctc_encoder_forward.5} parent=0 // pred_check_branch
    %134 = sbr.rel (%p132) target = $region37
  $region36: #{base_ctc_encoder_forward.5} parent=0 // pred_region
    %v135 = vld [vmem:[#allocation2] sm:$0xff]
    %v136 = vld [vmem:[%s2] sm:$0x1]
    %v138 = vlaneseq
    %v139 = vshrl.u32 %v138, 7
    %v140 = vsub.s32 0, %v139
    %v141 = vrot.slane %v136, %v140
    %v143 = vadd.f32 %v135, %v141
    %v144 = vmul.f32 %v143, 5.656854
    %v145 = vsel %vm130, %v144, 0.0
    %146 = vadd.xlane.f32.xlu0 %v145
    %v147 = vpop.xlane.xlu0 %146
    %v148 = vrcp.pop 32.0
    %v149 = vmul.f32 %v147, %v148
    %v150 = vsub.f32 %v144, %v149
    %v151 = vmul.f32 %v150, %v150
    %v152 = vsel %vm130, %v151, 0.0
    %153 = vadd.xlane.f32.xlu0 %v152
    %v154 = vpop.xlane.xlu0 %153
    %v155 = vmul.f32 %v154, %v148
    %v156 = vadd.f32 %v155, 1e-12
    %v157 = vrsqrt.pop %v156
    %v158 = vmul.f32 %v150, %v157
    %v159 = vld [vmem:[%s3] sm:$0x1]
    %v161 = vlaneseq
    %v162 = vshrl.u32 %v161, 7
    %v163 = vsub.s32 0, %v162
    %v164 = vrot.slane %v159, %v163
    %v166 = vmul.f32 %v158, %v164
    %v167 = vld [vmem:[%s4] sm:$0x1]
    %v169 = vlaneseq
    %v170 = vshrl.u32 %v169, 7
    %v171 = vsub.s32 0, %v170
    %v172 = vrot.slane %v167, %v171
    %v174 = vadd.f32 %v166, %v172
    %175 = vst.msk [vmem:[%s7] sm:$0xff] %vm130, %v174
    %v176 = vpack.c.bf16 %v174, %v174
    %v177 = vld [vmem:[%s5] sm:$0xf]
    %v178 = vld [vmem:[%s5 + $0x4] sm:$0xf]
    %v179 = vld [vmem:[%s5 + $0x8] sm:$0xf]
    %v180 = vld [vmem:[%s5 + $0xc] sm:$0xf]
    %v181 = vld [vmem:[%s6] sm:$0x1]
    %v183 = vlaneseq
    %v184 = vshrl.u32 %v183, 7
    %v185 = vsub.s32 0, %v184
    %v186 = vrot.slane %v181, %v185
    %v192 = vunpack.c.l.b16 %v177
    %v193 = vunpack.c.l.b16 %v178
    %v194 = vunpack.c.l.b16 %v179
    %v195 = vunpack.c.l.b16 %v180
    %v196 = vpack.c.b16 %v193, %v192
    %v197 = vpack.c.b16 %v195, %v194
    %v201 = vsel %vm130, %v176, 0
    %203 = vmatprep.subr.bf16.mxu0 0
    %204 = vmatpush1.bf16.msra.mxu0 %v196
    %205 = vmatprep.subr.bf16.mxu0 0
    %206 = vmatpush1.bf16.msra.mxu0 %v197
    %207 = vmatprep.subr.bf16.mxu0 0
    %208 = vmatpush1.bf16.msra.mxu0 0
    %209 = vmatprep.subr.bf16.mxu0 0
    %210 = vmatpush1.bf16.msra.mxu0 0
    %211 = vmatprep.subr.bf16.mxu0 0
    %212 = vmatpush1.bf16.msra.mxu0 0
    %213 = vmatprep.subr.bf16.mxu0 0
    %214 = vmatpush1.bf16.msra.mxu0 0
    %215 = vmatprep.subr.bf16.mxu0 0
    %216 = vmatpush1.bf16.msra.mxu0 0
    %217 = vmatprep.subr.bf16.mxu0 0
    %218 = vmatpush1.bf16.msra.mxu0 0
    %219 = vmatprep.subr.bf16.mxu0 0
    %220 = vmatpush1.bf16.msra.mxu0 0
    %221 = vmatprep.subr.bf16.mxu0 0
    %222 = vmatpush1.bf16.msra.mxu0 0
    %223 = vmatprep.subr.bf16.mxu0 0
    %224 = vmatpush1.bf16.msra.mxu0 0
    %225 = vmatprep.subr.bf16.mxu0 0
    %226 = vmatpush1.bf16.msra.mxu0 0
    %227 = vmatprep.subr.bf16.mxu0 0
    %228 = vmatpush1.bf16.msra.mxu0 0
    %229 = vmatprep.subr.bf16.mxu0 0
    %230 = vmatpush1.bf16.msra.mxu0 0
    %231 = vmatprep.subr.bf16.mxu0 0
    %232 = vmatpush1.bf16.msra.mxu0 0
    %233 = vmatprep.subr.bf16.mxu0 0
    %234 = vmatpush1.bf16.msra.mxu0 0
    %235 = vmatprep.mubr.bf16.mxu0 0
    %236 = vmatmul.mubr.bf16.gmra.mrb[0].mxu0 %v201
    %v237 = vpop.f32.mrb[0].mxu0
    %v238 = vadd.f32 %v186, %v237
    %v239 = vpop.f32.mrb[0].mxu0
    %v240 = vpop.f32.mrb[0].mxu0
    %v241 = vpop.f32.mrb[0].mxu0
    %242 = vdwg.mxu0
    %243 = vst [vmem:[%s8] sm:$0xff] %v238
  $region37: #{base_ctc_encoder_forward.5} parent=0 // pred_fallthru
    _
  // Predicated region
  $region38: #{base_ctc_encoder_forward.5} parent=0 // pred_check
    _
  $region39: #{base_ctc_encoder_forward.5} parent=0 // pred_check_branch
    %245 = sbr.rel (0) target = $region41
  $region40: #{base_ctc_encoder_forward.5} parent=0 // pred_region
    _
  $region41: #{base_ctc_encoder_forward.5} parent=0 // pred_fallthru
    _
  // Predicated region
  $region42: #{base_ctc_encoder_forward.5} parent=0 // pred_check
    _
  $region43: #{base_ctc_encoder_forward.5} parent=0 // pred_check_branch
    %247 = sbr.rel (0) target = $region45
  $region44: #{base_ctc_encoder_forward.5} parent=0 // pred_region
    _
  $region45: #{base_ctc_encoder_forward.5} parent=0 // pred_fallthru
    _
  // Predicated region
  $region46: #{base_ctc_encoder_forward.5} parent=0 // pred_check
    _
  $region47: #{base_ctc_encoder_forward.5} parent=0 // pred_check_branch
    %249 = sbr.rel (0) target = $region49
  $region48: #{base_ctc_encoder_forward.5} parent=0 // pred_region
    _
  $region49: #{base_ctc_encoder_forward.5} parent=0 // pred_fallthru
    _
  // Predicated region
  $region50: #{base_ctc_encoder_forward.5} parent=0 // pred_check
    _
  $region51: #{base_ctc_encoder_forward.5} parent=0 // pred_check_branch
    %251 = sbr.rel (0) target = $region53
  $region52: #{base_ctc_encoder_forward.5} parent=0 // pred_region
    _
  $region53: #{base_ctc_encoder_forward.5} parent=0 // pred_fallthru
    _

</llo_original>
